<compile_context>
chip_gen: v5e
topology: v5e:2x2
jax: 0.10.0
libtpu: 0.0.40
codegen_flags: <defaults>
</compile_context>

<pallas_src>
import functools

import numpy as np
import jax
import jax.numpy as jnp
from jax.experimental import pallas as pl
from jax.experimental.pallas import tpu as pltpu


def _bilinear_matrix(n_in, n_out):
    """(n_out, n_in) interpolation matrix matching torch F.interpolate(mode='bilinear',
    align_corners=False) along one axis."""
    rows = np.arange(n_out, dtype=np.float64)
    scale = n_in / n_out
    src = (rows + 0.5) * scale - 0.5
    src = np.maximum(src, 0.0)                       # PyTorch clamps negative source coords
    i0 = np.floor(src).astype(np.int64)
    i0 = np.minimum(i0, n_in - 1)
    i1 = np.minimum(i0 + 1, n_in - 1)
    lam = src - i0
    m = np.zeros((n_out, n_in), dtype=np.float64)
    r = np.arange(n_out)
    m[r, i0] += (1.0 - lam)
    m[r, i1] += lam
    return m


def _resize_fill_kernel(x_ref, a_big_ref, a_res_ref, b_gray_ref, b_res_ref, o_ref, *,
                        H, W, fh, fw, h_in, batch):
    # x_ref:      (B, h_in, C*w_in)   B images per grid step, channels packed along lanes.
    # a_big_ref:  (fh*H, h_in)        row-permuted big height-interpolation matrix (gray path).
    # a_res_ref:  (H, h_in)           plain height-interpolation matrix (per-channel resize).
    # b_gray_ref: (C*w_in, fw*W)      channel-mean + permuted big width-interpolation matrix.
    # b_res_ref:  (C*w_in, C*W+pad)   block-diag per-channel width resize, zero-padded so the
    #                                 output lane count is a multiple of 128.
    # o_ref:      (B, H, fh*fw*W + C*W + pad)   lane-dense output slab.
    cwin = x_ref.shape[-1]
    xflat = x_ref[...].reshape(batch * h_in, cwin)          # fold B into the matmul M dim
    # Stage 1 (batch-merged): width-axis interpolation, contracting the C*w_in lane axis.
    y_gray = jnp.dot(xflat, b_gray_ref[...], preferred_element_type=jnp.float32)  # (B*h_in, fw*W)
    y_res = jnp.dot(xflat, b_res_ref[...], preferred_element_type=jnp.float32)    # (B*h_in, C*W+pad)
    a_big = a_big_ref[...]
    a_res = a_res_ref[...]
    fw_w = fw * W
    # Stage 2 (per image): height-axis interpolation, contracting h_in; gray and resize parts
    # are separate matmuls so no unused cross blocks are ever computed.
    for b in range(batch):
        yg = y_gray[b * h_in:(b + 1) * h_in, :]
        yr = y_res[b * h_in:(b + 1) * h_in, :]
        z_g = jnp.dot(a_big, yg, preferred_element_type=jnp.float32)   # (fh*H, fw*W)
        z_r = jnp.dot(a_res, yr, preferred_element_type=jnp.float32)   # (H, C*W + pad)
        # gray-shuffle channel (a, b) lives at z_g[a*H:(a+1)*H, b*W:(b+1)*W]; for fixed `a` all b
        # are contiguous columns, so each row block maps to one contiguous output column slice.
        for a_i in range(fh):
            o_ref[b, :, a_i * fw_w:(a_i + 1) * fw_w] = z_g[a_i * H:(a_i + 1) * H, :]
        o_ref[b, :, fh * fw_w:] = z_r                                   # resize channels + pad


@functools.partial(jax.jit, static_argnames=("target_hw", "factors", "batch_per_step"))
def _resize_fill_batched(xs, a_big, a_res, b_gray, b_res, *, target_hw, factors, batch_per_step):
    """xs: (N, C, h_in, w_in) -> (N, fh*fw + C, H, W) float32, one pallas_call for the batch."""
    H, W = target_hw
    fh, fw = factors
    n, c, h_in, w_in = xs.shape
    kg = fh * fw
    used_cols = (kg + c) * W
    out_cols = kg * W + b_res.shape[1]                 # lane-padded: multiple of 128
    bsz = batch_per_step
    grid_n = pl.cdiv(n, bsz)
    n_pad = grid_n * bsz
    # pack channels next to width so stage 1 is a single batch-merged matmul (no in-kernel reshapes
    # beyond the trivial leading-dim merge)
    xs2 = xs.astype(b_gray.dtype).transpose(0, 2, 1, 3).reshape(n, h_in, c * w_in)
    if n_pad != n:
        xs2 = jnp.concatenate(
            [xs2, jnp.zeros((n_pad - n, h_in, c * w_in), xs2.dtype)], axis=0)
    kernel = functools.partial(_resize_fill_kernel, H=H, W=W, fh=fh, fw=fw,
                               h_in=h_in, batch=bsz)
    out2 = pl.pallas_call(
        kernel,
        out_shape=jax.ShapeDtypeStruct((n_pad, H, out_cols), jnp.float32),
        grid=(grid_n,),                                # B images per step, pipelined over the batch
        in_specs=[
            pl.BlockSpec((bsz, h_in, c * w_in), lambda i: (i, 0, 0)),
            # constant blocks: the block index never changes, so they are DMA'd once and stay
            # resident across the whole grid
            pl.BlockSpec(a_big.shape, lambda i: (0, 0)),
            pl.BlockSpec(a_res.shape, lambda i: (0, 0)),
            pl.BlockSpec(b_gray.shape, lambda i: (0, 0)),
            pl.BlockSpec(b_res.shape, lambda i: (0, 0)),
        ],
        out_specs=pl.BlockSpec((bsz, H, out_cols), lambda i: (i, 0, 0)),
        compiler_params=pltpu.CompilerParams(
            dimension_semantics=("parallel",),          # v7x: split grid steps across its 2 TCs
            vmem_limit_bytes=32 * 1024 * 1024),
    )(xs2, a_big, a_res, b_gray, b_res)
    out2 = out2[:n, :, :used_cols]                      # strip batch padding + lane padding
    # (N, H, (kg+C)*W) -> (N, kg+C, H, W)
    return out2.reshape(n, H, kg + c, W).transpose(0, 2, 1, 3)


class NekoResizeAndFillGX:
    """JAX/Pallas port of neko_resize_and_fill_gx (bilinear interpolate mode)."""

    def __init__(self, target_size, factor_h, factor_w, interpolate_mode="bilinear",
                 compute_dtype=jnp.float32):
        # TODO(synk): only the 'bilinear' interpolate mode of the reference is implemented.
        assert interpolate_mode == "bilinear"
        self.target_size = (int(target_size[0]), int(target_size[1]))
        self.fh = int(factor_h)
        self.fw = int(factor_w)
        self.gray_target_size = (self.fh * self.target_size[0], self.fw * self.target_size[1])
        # compute_dtype=jnp.bfloat16 trades precision for ~4x MXU throughput on v6e/v7x; kept
        # float32 by default so results match the reference to ~1e-5.
        self.compute_dtype = compute_dtype
        self._mat_cache = {}

    def _out_cols_padded(self, c):
        _, W = self.target_size
        used = (self.fh * self.fw + c) * W
        return -(-used // 128) * 128

    def _mats(self, c, h_in, w_in):
        key = (c, h_in, w_in)
        if key not in self._mat_cache:
            H, W = self.target_size
            fh, fw = self.fh, self.fw
            mh_big = _bilinear_matrix(h_in, fh * H)             # (fh*H, h_in)
            mw_big = _bilinear_matrix(w_in, fw * W)             # (fw*W, w_in)
            mh = _bilinear_matrix(h_in, H)                      # (H, h_in)
            mw = _bilinear_matrix(w_in, W)                      # (W, w_in)
            # gray-shuffle channel (a, b) reads big-grid rows i*fh+a and cols j*fw+b; pre-permute
            # the big matrices so each channel comes out as a contiguous (H, W) block of one matmul.
            mh_big_perm = np.concatenate([mh_big[a::fh] for a in range(fh)], axis=0)  # (fh*H, h_in)
            mw_big_perm = np.concatenate([mw_big[b::fw] for b in range(fw)], axis=0)  # (fw*W, w_in)
            gmean = np.tile(np.eye(w_in), (c, 1)) / c           # folds mean(dim=1) into the matmul
            b_gray = gmean @ mw_big_perm.T                      # (C*w_in, fw*W)
            # TODO(synk): the block-diagonal kron makes stage-1 resize FLOPs/VMEM grow as O(C^2);
            # for large C switch to a channels-on-sublane layout with a plain (w_in, W) matrix.
            b_res = np.kron(np.eye(c), mw.T)                    # (C*w_in, C*W) block-diag resize
            pad = self._out_cols_padded(c) - (fh * fw + c) * W
            if pad:
                # zero columns fold the output lane padding into the matmul, so the resize block
                # is stored as a single lane-dense slab that ends on a 128-lane boundary.
                b_res = np.concatenate([b_res, np.zeros((c * w_in, pad))], axis=1)
            dt = self.compute_dtype
            self._mat_cache[key] = (
                jnp.asarray(mh_big_perm, dtype=dt),
                jnp.asarray(mh, dtype=dt),
                jnp.asarray(b_gray, dtype=dt),
                jnp.asarray(b_res, dtype=dt),
            )
        return self._mat_cache[key]

    def _pick_batch(self, n, c, h_in, w_in):
        H, _ = self.target_size
        out_cols = self._out_cols_padded(c)
        # double-buffered f32 input + output blocks per image; stay well inside v7x's 64 MiB VMEM
        per_img = 4 * 2 * (h_in * c * w_in + H * out_cols)
        budget = 16 * 1024 * 1024
        b_mem = max(1, budget // max(per_img, 1))
        b_tc = max(1, -(-n // 2))       # keep >= 2 grid steps when n >= 2 (both v7x TCs busy)
        return int(max(1, min(16, b_mem, b_tc)))

    def __call__(self, tensors, bmasks=None):
        # TODO(synk): the bmasks branch of the reference indexes a Python list with a tensor-style
        # tuple (tarlist[:, 1]) and is not executable; only the bmasks=None path is ported.
        assert bmasks is None
        groups = {}
        for idx, t in enumerate(tensors):
            groups.setdefault(tuple(t.shape), []).append(idx)
        results = [None] * len(tensors)
        for (_, c, h_in, w_in), idxs in groups.items():
            xs = jnp.concatenate([tensors[i] for i in idxs], axis=0)   # (N, C, h_in, w_in)
            a_big, a_res, b_gray, b_res = self._mats(c, h_in, w_in)
            bsz = self._pick_batch(len(idxs), c, h_in, w_in)
            out = _resize_fill_batched(xs, a_big, a_res, b_gray, b_res,
                                       target_hw=self.target_size,
                                       factors=(self.fh, self.fw),
                                       batch_per_step=bsz)
            out = out.astype(xs.dtype)
            for j, i in enumerate(idxs):
                results[i] = out[j:j + 1]                              # keep the batch dim
        return results


def _reference(t, target_size, fh, fw):
    """Pure-JAX reference mirroring the PyTorch pipeline (big resize -> reshape/permute)."""
    H, W = target_size
    _, C, h_in, w_in = t.shape
    mh_big = jnp.asarray(_bilinear_matrix(h_in, fh * H), dtype=jnp.float32)
    mw_big = jnp.asarray(_bilinear_matrix(w_in, fw * W), dtype=jnp.float32)
    mh = jnp.asarray(_bilinear_matrix(h_in, H), dtype=jnp.float32)
    mw = jnp.asarray(_bilinear_matrix(w_in, W), dtype=jnp.float32)
    x = t[0].astype(jnp.float32)                        # (C, h_in, w_in)
    gray = jnp.mean(x, axis=0)                          # (h_in, w_in)
    igt = mh_big @ gray @ mw_big.T                      # (fh*H, fw*W)
    gshuf = igt.reshape(H, fh, W, fw).transpose(1, 3, 0, 2).reshape(fh * fw, H, W)
    res = jnp.einsum("ih,chw,jw->cij", mh, x, mw)       # (C, H, W)
    return jnp.concatenate([gshuf, res], axis=0)[None]


if __name__ == "__main__":
    key = jax.random.PRNGKey(0)
    keys = jax.random.split(key, 6)
    # batch-of-1 NCHW tensors as produced by the collate pipeline; five share a shape so the
    # multi-image-per-grid-step path is exercised (B=3, grid=2, ragged batch padding), and one
    # has a different shape (second shape group, single grid step).
    tensors = [jax.random.normal(keys[i], (1, 4, 16, 16), jnp.float32) for i in range(5)]
    tensors.append(jax.random.normal(keys[5], (1, 4, 12, 20), jnp.float32))

    mod = NekoResizeAndFillGX(target_size=(8, 8), factor_h=2, factor_w=2)
    outs = mod(tensors)
    outs = [jax.block_until_ready(o) for o in outs]

    for t, o in zip(tensors, outs):
        ref = _reference(t, (8, 8), 2, 2)
        assert o.shape == ref.shape == (1, 2 * 2 + 4, 8, 8), (o.shape, ref.shape)
        np.testing.assert_allclose(np.asarray(o), np.asarray(ref), rtol=1e-4, atol=1e-4)

    print("KERNEL_OK")
</pallas_src>

<mosaic_0001>
module attributes {stable_mosaic.version = 11 : i64} {
  func.func @_resize_fill_kernel(%arg0: i32, %arg1: memref<3x16x64xf32, #tpu.memory_space<vmem>>, %arg2: memref<16x16xf32, #tpu.memory_space<vmem>>, %arg3: memref<8x16xf32, #tpu.memory_space<vmem>>, %arg4: memref<64x16xf32, #tpu.memory_space<vmem>>, %arg5: memref<64x96xf32, #tpu.memory_space<vmem>>, %arg6: memref<3x8x128xf32, #tpu.memory_space<vmem>>) attributes {dimension_semantics = [#tpu.dimension_semantics<parallel>], iteration_bounds = array<i64: 2>, scalar_prefetch = 0 : i64, scratch_operands = 0 : i64, tpu.core_type = #tpu.core_type<tc>, window_params = [{transform_indices = @transform_0, window_bounds = array<i64: 3, 16, 64>}, {pipeline_mode = #tpu.pipeline_mode<synchronous>, transform_indices = @transform_1, window_bounds = array<i64: 16, 16>}, {pipeline_mode = #tpu.pipeline_mode<synchronous>, transform_indices = @transform_2, window_bounds = array<i64: 8, 16>}, {pipeline_mode = #tpu.pipeline_mode<synchronous>, transform_indices = @transform_3, window_bounds = array<i64: 64, 16>}, {pipeline_mode = #tpu.pipeline_mode<synchronous>, transform_indices = @transform_4, window_bounds = array<i64: 64, 96>}, {transform_indices = @transform_5, window_bounds = array<i64: 3, 8, 128>}]} {
    %c0 = arith.constant 0 : index
    %c0_0 = arith.constant 0 : index
    %c0_1 = arith.constant 0 : index
    %0 = vector.load %arg1[%c0, %c0_0, %c0_1] : memref<3x16x64xf32, #tpu.memory_space<vmem>>, vector<3x16x64xf32>
    %1 = vector.shape_cast %0 : vector<3x16x64xf32> to vector<48x64xf32>
    %c0_2 = arith.constant 0 : index
    %c0_3 = arith.constant 0 : index
    %2 = vector.load %arg4[%c0_2, %c0_3] : memref<64x16xf32, #tpu.memory_space<vmem>>, vector<64x16xf32>
    %cst = arith.constant dense<0.000000e+00> : vector<48x16xf32>
    %3 = tpu.matmul %1, %2, %cst {dimension_numbers = #tpu.dot_dimension_numbers<[1], [0], [0], [1], [0, 0, 1, 1], [], []>} : vector<48x64xf32>, vector<64x16xf32>, vector<48x16xf32> -> vector<48x16xf32>
    %c0_4 = arith.constant 0 : index
    %c0_5 = arith.constant 0 : index
    %4 = vector.load %arg5[%c0_4, %c0_5] : memref<64x96xf32, #tpu.memory_space<vmem>>, vector<64x96xf32>
    %cst_6 = arith.constant dense<0.000000e+00> : vector<48x96xf32>
    %5 = tpu.matmul %1, %4, %cst_6 {dimension_numbers = #tpu.dot_dimension_numbers<[1], [0], [0], [1], [0, 0, 1, 1], [], []>} : vector<48x64xf32>, vector<64x96xf32>, vector<48x96xf32> -> vector<48x96xf32>
    %c0_7 = arith.constant 0 : index
    %c0_8 = arith.constant 0 : index
    %6 = vector.load %arg2[%c0_7, %c0_8] : memref<16x16xf32, #tpu.memory_space<vmem>>, vector<16x16xf32>
    %c0_9 = arith.constant 0 : index
    %c0_10 = arith.constant 0 : index
    %7 = vector.load %arg3[%c0_9, %c0_10] : memref<8x16xf32, #tpu.memory_space<vmem>>, vector<8x16xf32>
    %8 = vector.extract_strided_slice %3 {offsets = [0, 0], sizes = [16, 16], strides = [1, 1]} : vector<48x16xf32> to vector<16x16xf32>
    %9 = vector.extract_strided_slice %5 {offsets = [0, 0], sizes = [16, 96], strides = [1, 1]} : vector<48x96xf32> to vector<16x96xf32>
    %cst_11 = arith.constant dense<0.000000e+00> : vector<16x16xf32>
    %10 = tpu.matmul %6, %8, %cst_11 {dimension_numbers = #tpu.dot_dimension_numbers<[1], [0], [0], [1], [0, 0, 1, 1], [], []>} : vector<16x16xf32>, vector<16x16xf32>, vector<16x16xf32> -> vector<16x16xf32>
    %cst_12 = arith.constant dense<0.000000e+00> : vector<8x96xf32>
    %11 = tpu.matmul %7, %9, %cst_12 {dimension_numbers = #tpu.dot_dimension_numbers<[1], [0], [0], [1], [0, 0, 1, 1], [], []>} : vector<8x16xf32>, vector<16x96xf32>, vector<8x96xf32> -> vector<8x96xf32>
    %12 = vector.extract_strided_slice %10 {offsets = [0, 0], sizes = [8, 16], strides = [1, 1]} : vector<16x16xf32> to vector<8x16xf32>
    %c0_13 = arith.constant 0 : index
    %c0_14 = arith.constant 0 : index
    %c0_15 = arith.constant 0 : index
    %13 = vector.load %arg6[%c0_13, %c0_14, %c0_15] : memref<3x8x128xf32, #tpu.memory_space<vmem>>, vector<1x8x16xf32>
    %14 = vector.shape_cast %13 : vector<1x8x16xf32> to vector<8x16xf32>
    %15 = vector.shape_cast %12 : vector<8x16xf32> to vector<1x8x16xf32>
    tpu.vector_store %arg6[%c0_13, %c0_14, %c0_15], %15 {strides = array<i32>} : memref<3x8x128xf32, #tpu.memory_space<vmem>>, vector<1x8x16xf32>,
    %16 = vector.extract_strided_slice %10 {offsets = [8, 0], sizes = [8, 16], strides = [1, 1]} : vector<16x16xf32> to vector<8x16xf32>
    %c0_16 = arith.constant 0 : index
    %c0_17 = arith.constant 0 : index
    %c16 = arith.constant 16 : index
    %17 = vector.load %arg6[%c0_16, %c0_17, %c16] : memref<3x8x128xf32, #tpu.memory_space<vmem>>, vector<1x8x16xf32>
    %18 = vector.shape_cast %17 : vector<1x8x16xf32> to vector<8x16xf32>
    %19 = vector.shape_cast %16 : vector<8x16xf32> to vector<1x8x16xf32>
    tpu.vector_store %arg6[%c0_16, %c0_17, %c16], %19 {strides = array<i32>} : memref<3x8x128xf32, #tpu.memory_space<vmem>>, vector<1x8x16xf32>,
    %c0_18 = arith.constant 0 : index
    %c0_19 = arith.constant 0 : index
    %c32 = arith.constant 32 : index
    %20 = vector.load %arg6[%c0_18, %c0_19, %c32] : memref<3x8x128xf32, #tpu.memory_space<vmem>>, vector<1x8x96xf32>
    %21 = vector.shape_cast %20 : vector<1x8x96xf32> to vector<8x96xf32>
    %22 = vector.shape_cast %11 : vector<8x96xf32> to vector<1x8x96xf32>
    tpu.vector_store %arg6[%c0_18, %c0_19, %c32], %22 {strides = array<i32>} : memref<3x8x128xf32, #tpu.memory_space<vmem>>, vector<1x8x96xf32>,
    %23 = vector.extract_strided_slice %3 {offsets = [16, 0], sizes = [16, 16], strides = [1, 1]} : vector<48x16xf32> to vector<16x16xf32>
    %24 = vector.extract_strided_slice %5 {offsets = [16, 0], sizes = [16, 96], strides = [1, 1]} : vector<48x96xf32> to vector<16x96xf32>
    %cst_20 = arith.constant dense<0.000000e+00> : vector<16x16xf32>
    %25 = tpu.matmul %6, %23, %cst_20 {dimension_numbers = #tpu.dot_dimension_numbers<[1], [0], [0], [1], [0, 0, 1, 1], [], []>} : vector<16x16xf32>, vector<16x16xf32>, vector<16x16xf32> -> vector<16x16xf32>
    %cst_21 = arith.constant dense<0.000000e+00> : vector<8x96xf32>
    %26 = tpu.matmul %7, %24, %cst_21 {dimension_numbers = #tpu.dot_dimension_numbers<[1], [0], [0], [1], [0, 0, 1, 1], [], []>} : vector<8x16xf32>, vector<16x96xf32>, vector<8x96xf32> -> vector<8x96xf32>
    %27 = vector.extract_strided_slice %25 {offsets = [0, 0], sizes = [8, 16], strides = [1, 1]} : vector<16x16xf32> to vector<8x16xf32>
    %c1 = arith.constant 1 : index
    %c0_22 = arith.constant 0 : index
    %c0_23 = arith.constant 0 : index
    %28 = vector.load %arg6[%c1, %c0_22, %c0_23] : memref<3x8x128xf32, #tpu.memory_space<vmem>>, vector<1x8x16xf32>
    %29 = vector.shape_cast %28 : vector<1x8x16xf32> to vector<8x16xf32>
    %30 = vector.shape_cast %27 : vector<8x16xf32> to vector<1x8x16xf32>
    tpu.vector_store %arg6[%c1, %c0_22, %c0_23], %30 {strides = array<i32>} : memref<3x8x128xf32, #tpu.memory_space<vmem>>, vector<1x8x16xf32>,
    %31 = vector.extract_strided_slice %25 {offsets = [8, 0], sizes = [8, 16], strides = [1, 1]} : vector<16x16xf32> to vector<8x16xf32>
    %c1_24 = arith.constant 1 : index
    %c0_25 = arith.constant 0 : index
    %c16_26 = arith.constant 16 : index
    %32 = vector.load %arg6[%c1_24, %c0_25, %c16_26] : memref<3x8x128xf32, #tpu.memory_space<vmem>>, vector<1x8x16xf32>
    %33 = vector.shape_cast %32 : vector<1x8x16xf32> to vector<8x16xf32>
    %34 = vector.shape_cast %31 : vector<8x16xf32> to vector<1x8x16xf32>
    tpu.vector_store %arg6[%c1_24, %c0_25, %c16_26], %34 {strides = array<i32>} : memref<3x8x128xf32, #tpu.memory_space<vmem>>, vector<1x8x16xf32>,
    %c1_27 = arith.constant 1 : index
    %c0_28 = arith.constant 0 : index
    %c32_29 = arith.constant 32 : index
    %35 = vector.load %arg6[%c1_27, %c0_28, %c32_29] : memref<3x8x128xf32, #tpu.memory_space<vmem>>, vector<1x8x96xf32>
    %36 = vector.shape_cast %35 : vector<1x8x96xf32> to vector<8x96xf32>
    %37 = vector.shape_cast %26 : vector<8x96xf32> to vector<1x8x96xf32>
    tpu.vector_store %arg6[%c1_27, %c0_28, %c32_29], %37 {strides = array<i32>} : memref<3x8x128xf32, #tpu.memory_space<vmem>>, vector<1x8x96xf32>,
    %38 = vector.extract_strided_slice %3 {offsets = [32, 0], sizes = [16, 16], strides = [1, 1]} : vector<48x16xf32> to vector<16x16xf32>
    %39 = vector.extract_strided_slice %5 {offsets = [32, 0], sizes = [16, 96], strides = [1, 1]} : vector<48x96xf32> to vector<16x96xf32>
    %cst_30 = arith.constant dense<0.000000e+00> : vector<16x16xf32>
    %40 = tpu.matmul %6, %38, %cst_30 {dimension_numbers = #tpu.dot_dimension_numbers<[1], [0], [0], [1], [0, 0, 1, 1], [], []>} : vector<16x16xf32>, vector<16x16xf32>, vector<16x16xf32> -> vector<16x16xf32>
    %cst_31 = arith.constant dense<0.000000e+00> : vector<8x96xf32>
    %41 = tpu.matmul %7, %39, %cst_31 {dimension_numbers = #tpu.dot_dimension_numbers<[1], [0], [0], [1], [0, 0, 1, 1], [], []>} : vector<8x16xf32>, vector<16x96xf32>, vector<8x96xf32> -> vector<8x96xf32>
    %42 = vector.extract_strided_slice %40 {offsets = [0, 0], sizes = [8, 16], strides = [1, 1]} : vector<16x16xf32> to vector<8x16xf32>
    %c2 = arith.constant 2 : index
    %c0_32 = arith.constant 0 : index
    %c0_33 = arith.constant 0 : index
    %43 = vector.load %arg6[%c2, %c0_32, %c0_33] : memref<3x8x128xf32, #tpu.memory_space<vmem>>, vector<1x8x16xf32>
    %44 = vector.shape_cast %43 : vector<1x8x16xf32> to vector<8x16xf32>
    %45 = vector.shape_cast %42 : vector<8x16xf32> to vector<1x8x16xf32>
    tpu.vector_store %arg6[%c2, %c0_32, %c0_33], %45 {strides = array<i32>} : memref<3x8x128xf32, #tpu.memory_space<vmem>>, vector<1x8x16xf32>,
    %46 = vector.extract_strided_slice %40 {offsets = [8, 0], sizes = [8, 16], strides = [1, 1]} : vector<16x16xf32> to vector<8x16xf32>
    %c2_34 = arith.constant 2 : index
    %c0_35 = arith.constant 0 : index
    %c16_36 = arith.constant 16 : index
    %47 = vector.load %arg6[%c2_34, %c0_35, %c16_36] : memref<3x8x128xf32, #tpu.memory_space<vmem>>, vector<1x8x16xf32>
    %48 = vector.shape_cast %47 : vector<1x8x16xf32> to vector<8x16xf32>
    %49 = vector.shape_cast %46 : vector<8x16xf32> to vector<1x8x16xf32>
    tpu.vector_store %arg6[%c2_34, %c0_35, %c16_36], %49 {strides = array<i32>} : memref<3x8x128xf32, #tpu.memory_space<vmem>>, vector<1x8x16xf32>,
    %c2_37 = arith.constant 2 : index
    %c0_38 = arith.constant 0 : index
    %c32_39 = arith.constant 32 : index
    %50 = vector.load %arg6[%c2_37, %c0_38, %c32_39] : memref<3x8x128xf32, #tpu.memory_space<vmem>>, vector<1x8x96xf32>
    %51 = vector.shape_cast %50 : vector<1x8x96xf32> to vector<8x96xf32>
    %52 = vector.shape_cast %41 : vector<8x96xf32> to vector<1x8x96xf32>
    tpu.vector_store %arg6[%c2_37, %c0_38, %c32_39], %52 {strides = array<i32>} : memref<3x8x128xf32, #tpu.memory_space<vmem>>, vector<1x8x96xf32>,
    return
  }
  func.func @transform_0(%arg0: i32) -> (i32, i32, i32) {
    %c0_i32 = arith.constant 0 : i32
    %c0_i32_0 = arith.constant 0 : i32
    %c0_i32_1 = arith.constant 0 : i32
    return %arg0, %c0_i32, %c0_i32_0 : i32, i32, i32
  }
  func.func @transform_1(%arg0: i32) -> (i32, i32) {
    %c0_i32 = arith.constant 0 : i32
    %c0_i32_0 = arith.constant 0 : i32
    %c0_i32_1 = arith.constant 0 : i32
    return %c0_i32, %c0_i32_0 : i32, i32
  }
  func.func @transform_2(%arg0: i32) -> (i32, i32) {
    %c0_i32 = arith.constant 0 : i32
    %c0_i32_0 = arith.constant 0 : i32
    %c0_i32_1 = arith.constant 0 : i32
    return %c0_i32, %c0_i32_0 : i32, i32
  }
  func.func @transform_3(%arg0: i32) -> (i32, i32) {
    %c0_i32 = arith.constant 0 : i32
    %c0_i32_0 = arith.constant 0 : i32
    %c0_i32_1 = arith.constant 0 : i32
    return %c0_i32, %c0_i32_0 : i32, i32
  }
  func.func @transform_4(%arg0: i32) -> (i32, i32) {
    %c0_i32 = arith.constant 0 : i32
    %c0_i32_0 = arith.constant 0 : i32
    %c0_i32_1 = arith.constant 0 : i32
    return %c0_i32, %c0_i32_0 : i32, i32
  }
  func.func @transform_5(%arg0: i32) -> (i32, i32, i32) {
    %c0_i32 = arith.constant 0 : i32
    %c0_i32_0 = arith.constant 0 : i32
    %c0_i32_1 = arith.constant 0 : i32
    return %arg0, %c0_i32, %c0_i32_0 : i32, i32, i32
  }
}

</mosaic_0001>

<llo_original>
// kernel: _resize_fill_batched.1
$region0: #{_resize_fill_batched.1}
  #allocation0 [shape = 'u32[]', space=smem, size = 0x4, offset = 0x4, fixed_abs, tag = 'smem constant byte address 0x4 - core index']
  #allocation1 [shape = 'u32[72,128]{1,0:T(1,128)}', space=vmem, size = 0x9000, scoped, tag = 'internal scratch']
  %s0 = inlined_call_operand.vmem [shape: f32[6,16,64], index: 0, kind: input, shape index: {}]
  %s1 = inlined_call_operand.vmem [shape: f32[16,16], index: 1, kind: input, shape index: {}]
  %s2 = inlined_call_operand.vmem [shape: f32[8,16], index: 2, kind: input, shape index: {}]
  %s3 = inlined_call_operand.vmem [shape: f32[64,16], index: 3, kind: input, shape index: {}]
  %s4 = inlined_call_operand.vmem [shape: f32[64,96], index: 4, kind: input, shape index: {}]
  %s5 = inlined_call_operand.vmem [shape: f32[6,8,128], index: 5, kind: output, shape index: {}]
  %s6 = sld [smem:[#allocation0]]
  $region53: #{_resize_fill_batched.1} parent=0
    _
  %s8 = ssub.s32 1, %s6
  %s9 = scalar_select 0, %s8, %s6
  loop: start=0, step=1, limit=4
  $region2: #{_resize_fill_batched.1} parent=0 // loop_pre_header
    _
  $region3: #{_resize_fill_batched.1} parent=0 // loop_header
    %s11 = sphi 0, %s15
    %p12 = scmp.ge.s32.totalorder %s11, 4
    %s21 = sphi 0, %s23
    %s24 = sphi 0, %s21
    %s25 = sphi 0, %s24
    %s41 = sphi 0, %s25
    %s45 = sphi 0, %s45
    %s47 = sphi 0, %s45
    %s48 = sphi 0, %s47
    %s62 = sphi 0, %s48
    %s66 = sphi 0, %s66
    %s68 = sphi 0, %s66
    %s69 = sphi 0, %s68
    %s83 = sphi 0, %s69
    %s87 = sphi 0, %s87
    %s89 = sphi 0, %s87
    %s90 = sphi 0, %s89
    %s104 = sphi 0, %s90
    %s108 = sphi 0, %s108
    %s110 = sphi 0, %s108
    %s111 = sphi 0, %s110
    %s125 = sphi 0, %s111
    %s131 = sphi 0, %s133
    %s134 = sphi 0, %s131
    %s135 = sphi 0, %s134
    %s151 = sphi 0, %s135
  $region4: #{_resize_fill_batched.1} parent=0 // loop_header_branch
    %14 = sbr.rel (%p12) target = $region8
  $region5: #{_resize_fill_batched.1} parent=0 // loop_body
    %s16 = ssub.s32 %s11, 1
    %s17 = ssub.s32 %s11, 2
    %s18 = sadd.s32 %s11, 1
    %s19 = ssub.s32 %s11, %s18
    %p20 = scmp.eq.s32.totalorder %s19, 0
    %s22 = sadd.s32 %s21, 1
    %s23 = scalar_select %p20, %s21, %s22
    %p26 = pneg %p20
    %p27 = scmp.eq.s32.totalorder %s11, 1
    %p28 = por %p26, %p27
    %p29 = scmp.ne.s32.totalorder %s21, %s24
    %p30 = scmp.eq.s32.totalorder %s11, 0
    %p31 = por %p29, %p30
    %p32 = scmp.ne.s32.totalorder %s21, %s24
    %p33 = scmp.eq.s32.totalorder %s16, 1
    %p34 = por %p32, %p33
    %p35 = scmp.ne.s32.totalorder %s24, %s25
    %p36 = scmp.eq.s32.totalorder %s16, 0
    %p37 = por %p35, %p36
    %p38 = scmp.ne.s32.totalorder %s24, %s25
    %p39 = scmp.eq.s32.totalorder %s17, 1
    %p40 = por %p38, %p39
    %p42 = scmp.ne.s32.totalorder %s25, %s41
    %p43 = scmp.eq.s32.totalorder %s17, 0
    %p44 = por %p42, %p43
    %s46 = sadd.s32 %s45, 1
    %p49 = scmp.eq.s32.totalorder %s11, 1
    %p50 = scmp.ne.s32.totalorder %s45, %s47
    %p51 = scmp.eq.s32.totalorder %s11, 0
    %p52 = por %p50, %p51
    %p53 = scmp.ne.s32.totalorder %s45, %s47
    %p54 = scmp.eq.s32.totalorder %s16, 1
    %p55 = por %p53, %p54
    %p56 = scmp.ne.s32.totalorder %s47, %s48
    %p57 = scmp.eq.s32.totalorder %s16, 0
    %p58 = por %p56, %p57
    %p59 = scmp.ne.s32.totalorder %s47, %s48
    %p60 = scmp.eq.s32.totalorder %s17, 1
    %p61 = por %p59, %p60
    %p63 = scmp.ne.s32.totalorder %s48, %s62
    %p64 = scmp.eq.s32.totalorder %s17, 0
    %p65 = por %p63, %p64
    %s67 = sadd.s32 %s66, 1
    %p70 = scmp.eq.s32.totalorder %s11, 1
    %p71 = scmp.ne.s32.totalorder %s66, %s68
    %p72 = scmp.eq.s32.totalorder %s11, 0
    %p73 = por %p71, %p72
    %p74 = scmp.ne.s32.totalorder %s66, %s68
    %p75 = scmp.eq.s32.totalorder %s16, 1
    %p76 = por %p74, %p75
    %p77 = scmp.ne.s32.totalorder %s68, %s69
    %p78 = scmp.eq.s32.totalorder %s16, 0
    %p79 = por %p77, %p78
    %p80 = scmp.ne.s32.totalorder %s68, %s69
    %p81 = scmp.eq.s32.totalorder %s17, 1
    %p82 = por %p80, %p81
    %p84 = scmp.ne.s32.totalorder %s69, %s83
    %p85 = scmp.eq.s32.totalorder %s17, 0
    %p86 = por %p84, %p85
    %s88 = sadd.s32 %s87, 1
    %p91 = scmp.eq.s32.totalorder %s11, 1
    %p92 = scmp.ne.s32.totalorder %s87, %s89
    %p93 = scmp.eq.s32.totalorder %s11, 0
    %p94 = por %p92, %p93
    %p95 = scmp.ne.s32.totalorder %s87, %s89
    %p96 = scmp.eq.s32.totalorder %s16, 1
    %p97 = por %p95, %p96
    %p98 = scmp.ne.s32.totalorder %s89, %s90
    %p99 = scmp.eq.s32.totalorder %s16, 0
    %p100 = por %p98, %p99
    %p101 = scmp.ne.s32.totalorder %s89, %s90
    %p102 = scmp.eq.s32.totalorder %s17, 1
    %p103 = por %p101, %p102
    %p105 = scmp.ne.s32.totalorder %s90, %s104
    %p106 = scmp.eq.s32.totalorder %s17, 0
    %p107 = por %p105, %p106
    %s109 = sadd.s32 %s108, 1
    %p112 = scmp.eq.s32.totalorder %s11, 1
    %p113 = scmp.ne.s32.totalorder %s108, %s110
    %p114 = scmp.eq.s32.totalorder %s11, 0
    %p115 = por %p113, %p114
    %p116 = scmp.ne.s32.totalorder %s108, %s110
    %p117 = scmp.eq.s32.totalorder %s16, 1
    %p118 = por %p116, %p117
    %p119 = scmp.ne.s32.totalorder %s110, %s111
    %p120 = scmp.eq.s32.totalorder %s16, 0
    %p121 = por %p119, %p120
    %p122 = scmp.ne.s32.totalorder %s110, %s111
    %p123 = scmp.eq.s32.totalorder %s17, 1
    %p124 = por %p122, %p123
    %p126 = scmp.ne.s32.totalorder %s111, %s125
    %p127 = scmp.eq.s32.totalorder %s17, 0
    %p128 = por %p126, %p127
    %s129 = ssub.s32 %s11, %s18
    %p130 = scmp.eq.s32.totalorder %s129, 0
    %s132 = sadd.s32 %s131, 1
    %s133 = scalar_select %p130, %s131, %s132
    %p136 = pneg %p130
    %p137 = scmp.eq.s32.totalorder %s11, 1
    %p138 = por %p136, %p137
    %p139 = scmp.ne.s32.totalorder %s131, %s134
    %p140 = scmp.eq.s32.totalorder %s11, 0
    %p141 = por %p139, %p140
    %p142 = scmp.ne.s32.totalorder %s131, %s134
    %p143 = scmp.eq.s32.totalorder %s16, 1
    %p144 = por %p142, %p143
    %p145 = scmp.ne.s32.totalorder %s134, %s135
    %p146 = scmp.eq.s32.totalorder %s16, 0
    %p147 = por %p145, %p146
    %p148 = scmp.ne.s32.totalorder %s134, %s135
    %p149 = scmp.eq.s32.totalorder %s17, 1
    %p150 = por %p148, %p149
    %p152 = scmp.ne.s32.totalorder %s135, %s151
    %p153 = scmp.eq.s32.totalorder %s17, 0
    %p154 = por %p152, %p153
    %p155 = scmp.le.s32.totalorder 1, %s11
    %p156 = scmp.lt.s32.totalorder %s11, 3
    %p157 = pnand %p155, %p156
    %p158 = pneg %p157
    // Predicated region
    $region9: #{_resize_fill_batched.1} parent=5 // pred_check
      _
    $region10: #{_resize_fill_batched.1} parent=5 // pred_check_branch
      %160 = sbr.rel (%p157) target = $region12
    $region11: #{_resize_fill_batched.1} parent=5 // pred_region
      %s161 = ssub.s32 %s11, 1
      // Predicated region
      $region13: #{_resize_fill_batched.1} parent=11 // pred_check
        %p162 = pneg %p58
      $region14: #{_resize_fill_batched.1} parent=11 // pred_check_branch
        %164 = sbr.rel (%p162) target = $region16
      $region15: #{_resize_fill_batched.1} parent=11 // pred_region
        _
      $region16: #{_resize_fill_batched.1} parent=11 // pred_fallthru
        _
      // Predicated region
      $region17: #{_resize_fill_batched.1} parent=11 // pred_check
        %p165 = pneg %p79
      $region18: #{_resize_fill_batched.1} parent=11 // pred_check_branch
        %167 = sbr.rel (%p165) target = $region20
      $region19: #{_resize_fill_batched.1} parent=11 // pred_region
        _
      $region20: #{_resize_fill_batched.1} parent=11 // pred_fallthru
        _
      // Predicated region
      $region21: #{_resize_fill_batched.1} parent=11 // pred_check
        %p168 = pneg %p100
      $region22: #{_resize_fill_batched.1} parent=11 // pred_check_branch
        %170 = sbr.rel (%p168) target = $region24
      $region23: #{_resize_fill_batched.1} parent=11 // pred_region
        _
      $region24: #{_resize_fill_batched.1} parent=11 // pred_fallthru
        _
      // Predicated region
      $region25: #{_resize_fill_batched.1} parent=11 // pred_check
        %p171 = pneg %p121
      $region26: #{_resize_fill_batched.1} parent=11 // pred_check_branch
        %173 = sbr.rel (%p171) target = $region28
      $region27: #{_resize_fill_batched.1} parent=11 // pred_region
        _
      $region28: #{_resize_fill_batched.1} parent=11 // pred_fallthru
        _
    $region12: #{_resize_fill_batched.1} parent=5 // pred_fallthru
      _
    %p174 = scmp.lt.s32.totalorder %s11, 2
    // Predicated region
    $region29: #{_resize_fill_batched.1} parent=5 // pred_check
      %p175 = pneg %p174
    $region30: #{_resize_fill_batched.1} parent=5 // pred_check_branch
      %177 = sbr.rel (%p175) target = $region32
    $region31: #{_resize_fill_batched.1} parent=5 // pred_region
      // Predicated region
      $region33: #{_resize_fill_batched.1} parent=31 // pred_check
        %p178 = pneg %p31
      $region34: #{_resize_fill_batched.1} parent=31 // pred_check_branch
        %180 = sbr.rel (%p178) target = $region36
      $region35: #{_resize_fill_batched.1} parent=31 // pred_region
        %s181 = smul.u32 3, %s11
        %p182 = scmp.lt.s32.totalorder %s181, 5
        %s183 = scalar_select %p182, %s181, 5
        %s184 = smul.addr %s183, 2
        %s185 = smul.addr %s184, 8
        %s186 = scalar_lea.vmem %s0, %s185
        %s187 = smul.u32 3, %s11
      $region36: #{_resize_fill_batched.1} parent=31 // pred_fallthru
        _
    $region32: #{_resize_fill_batched.1} parent=5 // pred_fallthru
      _
    %p188 = scmp.le.s32.totalorder 1, %s11
    %p189 = scmp.lt.s32.totalorder %s11, 3
    %p190 = pnand %p188, %p189
    %p191 = pneg %p190
    // Predicated region
    $region37: #{_resize_fill_batched.1} parent=5 // pred_check
      _
    $region38: #{_resize_fill_batched.1} parent=5 // pred_check_branch
      %193 = sbr.rel (%p190) target = $region40
    $region39: #{_resize_fill_batched.1} parent=5 // pred_region
      %s194 = ssub.s32 %s11, 1
      %s195 = smul.u32 3, %s16
      %p196 = scmp.lt.s32.totalorder %s195, 5
      %s197 = scalar_select %p196, %s195, 5
      %s198 = smul.addr %s197, 2
      %s199 = smul.addr %s198, 8
      %s200 = scalar_lea.vmem %s0, %s199
      %p201 = pneg %p37
      %p202 = pneg %p34
      %p203 = pneg %p58
      %p204 = pneg %p55
      %p205 = pneg %p79
      %p206 = pneg %p76
      %p207 = pneg %p100
      %p208 = pneg %p97
      %p209 = pneg %p121
      %p210 = pneg %p118
      %p211 = pneg %p147
      %p212 = pneg %p144
      %s213 = smul.u32 3, %s16
      %p214 = scmp.lt.s32.totalorder %s213, 5
      %s215 = scalar_select %p214, %s213, 5
      %s216 = smul.addr %s215, 8
      %s217 = scalar_lea.vmem %s5, %s216
      %s218 = smul.u32 3, %s16
      %p219 = scmp.lt.s32.totalorder %s218, 5
      %s220 = scalar_select %p219, %s218, 5
      %s221 = smul.addr %s220, 2
      %s222 = smul.addr %s221, 8
      %s223 = scalar_lea.vmem %s0, %s222
      %s224 = smul.u32 3, %s16
      %s225 = smul.u32 3, %s16
      %p226 = scmp.lt.s32.totalorder %s225, 5
      %s227 = scalar_select %p226, %s225, 5
      %s228 = smul.addr %s227, 8
      %s229 = scalar_lea.vmem %s5, %s228
      %s230 = smul.u32 3, %s16
      %v231 = vld [vmem:[%s223] sm:$0xff]
      %v232 = vld [vmem:[%s223 + $0x8] sm:$0xff]
      %v233 = vld [vmem:[%s223 + $0x10] sm:$0xff]
      %v234 = vld [vmem:[%s223 + $0x18] sm:$0xff]
      %v235 = vld [vmem:[%s223 + $0x20] sm:$0xff]
      %v236 = vld [vmem:[%s223 + $0x28] sm:$0xff]
      %v237 = vld [vmem:[%s3] sm:$0xff]
      %v238 = vld [vmem:[%s3 + $0x8] sm:$0xff]
      %v239 = vld [vmem:[%s3 + $0x10] sm:$0xff]
      %v240 = vld [vmem:[%s3 + $0x18] sm:$0xff]
      %v241 = vld [vmem:[%s3 + $0x20] sm:$0xff]
      %v242 = vld [vmem:[%s3 + $0x28] sm:$0xff]
      %v243 = vld [vmem:[%s3 + $0x30] sm:$0xff]
      %v244 = vld [vmem:[%s3 + $0x38] sm:$0xff]
      %vm245 = vcmask 523264
      %v247 = vsel %vm245, %v231, 0
      %v250 = vsel %vm245, %v232, 0
      %v253 = vsel %vm245, %v233, 0
      %v256 = vsel %vm245, %v234, 0
      %v259 = vsel %vm245, %v235, 0
      %v262 = vsel %vm245, %v236, 0
      %264 = vmatpush.msra.mxu0 0.0
      %265 = vmatpush.msra.mxu0 0.0
      %266 = vmatpush.msra.mxu0 0.0
      %267 = vmatpush.msra.mxu0 0.0
      %268 = vmatpush.msra.mxu0 0.0
      %269 = vmatpush.msra.mxu0 0.0
      %270 = vmatpush.msra.mxu0 0.0
      %271 = vmatpush.msra.mxu0 0.0
      %272 = vmatpush.msra.mxu0 %v244
      %273 = vmatpush.msra.mxu0 %v243
      %274 = vmatpush.msra.mxu0 %v242
      %275 = vmatpush.msra.mxu0 %v241
      %276 = vmatpush.msra.mxu0 %v240
      %277 = vmatpush.msra.mxu0 %v239
      %278 = vmatpush.msra.mxu0 %v238
      %279 = vmatpush.msra.mxu0 %v237
      %280 = vmatmul.f32.gmra.mxu0 %v247
      %v281 = vpop.f32.mrf.mxu0
      %v282 = vadd.f32 0.0, %v281
      %283 = vmatmul.f32.gmra.mxu0 %v250
      %v284 = vpop.f32.mrf.mxu0
      %v285 = vadd.f32 0.0, %v284
      %286 = vmatmul.f32.gmra.mxu0 %v253
      %v287 = vpop.f32.mrf.mxu0
      %v288 = vadd.f32 0.0, %v287
      %289 = vmatmul.f32.gmra.mxu0 %v256
      %v290 = vpop.f32.mrf.mxu0
      %v291 = vadd.f32 0.0, %v290
      %292 = vmatmul.f32.gmra.mxu0 %v259
      %v293 = vpop.f32.mrf.mxu0
      %v294 = vadd.f32 0.0, %v293
      %295 = vmatmul.f32.gmra.mxu0 %v262
      %v296 = vpop.f32.mrf.mxu0
      %v297 = vadd.f32 0.0, %v296
      %298 = vdwg.mxu0
      %v299 = vld [vmem:[%s4] sm:$0xff]
      %v300 = vld [vmem:[%s4 + $0x8] sm:$0xff]
      %v301 = vld [vmem:[%s4 + $0x10] sm:$0xff]
      %v302 = vld [vmem:[%s4 + $0x18] sm:$0xff]
      %v303 = vld [vmem:[%s4 + $0x20] sm:$0xff]
      %v304 = vld [vmem:[%s4 + $0x28] sm:$0xff]
      %v305 = vld [vmem:[%s4 + $0x30] sm:$0xff]
      %v306 = vld [vmem:[%s4 + $0x38] sm:$0xff]
      %307 = vmatpush.msra.mxu0 0.0
      %308 = vmatpush.msra.mxu0 0.0
      %309 = vmatpush.msra.mxu0 0.0
      %310 = vmatpush.msra.mxu0 0.0
      %311 = vmatpush.msra.mxu0 0.0
      %312 = vmatpush.msra.mxu0 0.0
      %313 = vmatpush.msra.mxu0 0.0
      %314 = vmatpush.msra.mxu0 0.0
      %315 = vmatpush.msra.mxu0 %v306
      %316 = vmatpush.msra.mxu0 %v305
      %317 = vmatpush.msra.mxu0 %v304
      %318 = vmatpush.msra.mxu0 %v303
      %319 = vmatpush.msra.mxu0 %v302
      %320 = vmatpush.msra.mxu0 %v301
      %321 = vmatpush.msra.mxu0 %v300
      %322 = vmatpush.msra.mxu0 %v299
      %323 = vmatmul.f32.gmra.mxu0 %v247
      %v324 = vpop.f32.mrf.mxu0
      %v325 = vadd.f32 0.0, %v324
      %326 = vmatmul.f32.gmra.mxu0 %v250
      %v327 = vpop.f32.mrf.mxu0
      %v328 = vadd.f32 0.0, %v327
      %329 = vmatmul.f32.gmra.mxu0 %v253
      %v330 = vpop.f32.mrf.mxu0
      %v331 = vadd.f32 0.0, %v330
      %332 = vmatmul.f32.gmra.mxu0 %v256
      %v333 = vpop.f32.mrf.mxu0
      %v334 = vadd.f32 0.0, %v333
      %335 = vmatmul.f32.gmra.mxu0 %v259
      %v336 = vpop.f32.mrf.mxu0
      %v337 = vadd.f32 0.0, %v336
      %338 = vmatmul.f32.gmra.mxu0 %v262
      %v339 = vpop.f32.mrf.mxu0
      %v340 = vadd.f32 0.0, %v339
      %341 = vdwg.mxu0
      %v342 = vld [vmem:[%s1] sm:$0xff]
      %v343 = vld [vmem:[%s1 + $0x8] sm:$0xff]
      %v344 = vld [vmem:[%s2] sm:$0xff]
      %vm345 = vcmask 130048
      %v347 = vsel %vm345, %v342, 0
      %v350 = vsel %vm345, %v343, 0
      %352 = vmatpush.msra.mxu0 0.0
      %353 = vmatpush.msra.mxu0 0.0
      %354 = vmatpush.msra.mxu0 0.0
      %355 = vmatpush.msra.mxu0 0.0
      %356 = vmatpush.msra.mxu0 0.0
      %357 = vmatpush.msra.mxu0 0.0
      %358 = vmatpush.msra.mxu0 0.0
      %359 = vmatpush.msra.mxu0 0.0
      %360 = vmatpush.msra.mxu0 0.0
      %361 = vmatpush.msra.mxu0 0.0
      %362 = vmatpush.msra.mxu0 0.0
      %363 = vmatpush.msra.mxu0 0.0
      %364 = vmatpush.msra.mxu0 0.0
      %365 = vmatpush.msra.mxu0 0.0
      %366 = vmatpush.msra.mxu0 %v285
      %367 = vmatpush.msra.mxu0 %v282
      %368 = vmatmul.f32.gmra.mxu0 %v347
      %v369 = vpop.f32.mrf.mxu0
      %v370 = vadd.f32 0.0, %v369
      %371 = vmatmul.f32.gmra.mxu0 %v350
      %v372 = vpop.f32.mrf.mxu0
      %v373 = vadd.f32 0.0, %v372
      %374 = vdwg.mxu0
      %v376 = vsel %vm345, %v344, 0
      %378 = vmatpush.msra.mxu0 0.0
      %379 = vmatpush.msra.mxu0 0.0
      %380 = vmatpush.msra.mxu0 0.0
      %381 = vmatpush.msra.mxu0 0.0
      %382 = vmatpush.msra.mxu0 0.0
      %383 = vmatpush.msra.mxu0 0.0
      %384 = vmatpush.msra.mxu0 0.0
      %385 = vmatpush.msra.mxu0 0.0
      %386 = vmatpush.msra.mxu0 0.0
      %387 = vmatpush.msra.mxu0 0.0
      %388 = vmatpush.msra.mxu0 0.0
      %389 = vmatpush.msra.mxu0 0.0
      %390 = vmatpush.msra.mxu0 0.0
      %391 = vmatpush.msra.mxu0 0.0
      %392 = vmatpush.msra.mxu0 %v328
      %393 = vmatpush.msra.mxu0 %v325
      %394 = vmatmul.f32.gmra.mxu0 %v376
      %v395 = vpop.f32.mrf.mxu0
      %v396 = vadd.f32 0.0, %v395
      %397 = vdwg.mxu0
      %398 = vst.msk [vmem:[%s229] sm:$0xff] %vm345, %v370
      %400 = vrot.lane.b32.xlu0 %v373, 16
      %v401 = vpop.permute.xlu0 %400
      %vm403 = vcmask 261248
      %404 = vst.msk [vmem:[%s229] sm:$0xff] %vm403, %v401
      %406 = vrot.lane.b32.xlu0 %v396, 32
      %v407 = vpop.permute.xlu0 %406
      %vm409 = vcmask 1047808
      %410 = vst.msk [vmem:[%s229] sm:$0xff] %vm409, %v407
      %411 = vmatpush.msra.mxu0 0.0
      %412 = vmatpush.msra.mxu0 0.0
      %413 = vmatpush.msra.mxu0 0.0
      %414 = vmatpush.msra.mxu0 0.0
      %415 = vmatpush.msra.mxu0 0.0
      %416 = vmatpush.msra.mxu0 0.0
      %417 = vmatpush.msra.mxu0 0.0
      %418 = vmatpush.msra.mxu0 0.0
      %419 = vmatpush.msra.mxu0 0.0
      %420 = vmatpush.msra.mxu0 0.0
      %421 = vmatpush.msra.mxu0 0.0
      %422 = vmatpush.msra.mxu0 0.0
      %423 = vmatpush.msra.mxu0 0.0
      %424 = vmatpush.msra.mxu0 0.0
      %425 = vmatpush.msra.mxu0 %v291
      %426 = vmatpush.msra.mxu0 %v288
      %427 = vmatmul.f32.gmra.mxu0 %v347
      %v428 = vpop.f32.mrf.mxu0
      %v429 = vadd.f32 0.0, %v428
      %430 = vmatmul.f32.gmra.mxu0 %v350
      %v431 = vpop.f32.mrf.mxu0
      %v432 = vadd.f32 0.0, %v431
      %433 = vdwg.mxu0
      %434 = vmatpush.msra.mxu0 0.0
      %435 = vmatpush.msra.mxu0 0.0
      %436 = vmatpush.msra.mxu0 0.0
      %437 = vmatpush.msra.mxu0 0.0
      %438 = vmatpush.msra.mxu0 0.0
      %439 = vmatpush.msra.mxu0 0.0
      %440 = vmatpush.msra.mxu0 0.0
      %441 = vmatpush.msra.mxu0 0.0
      %442 = vmatpush.msra.mxu0 0.0
      %443 = vmatpush.msra.mxu0 0.0
      %444 = vmatpush.msra.mxu0 0.0
      %445 = vmatpush.msra.mxu0 0.0
      %446 = vmatpush.msra.mxu0 0.0
      %447 = vmatpush.msra.mxu0 0.0
      %448 = vmatpush.msra.mxu0 %v334
      %449 = vmatpush.msra.mxu0 %v331
      %450 = vmatmul.f32.gmra.mxu0 %v376
      %v451 = vpop.f32.mrf.mxu0
      %v452 = vadd.f32 0.0, %v451
      %453 = vdwg.mxu0
      %s454 = scalar_lea.vmem %s229, 8
      %455 = vst.msk [vmem:[%s454] sm:$0xff] %vm345, %v429
      %457 = vrot.lane.b32.xlu0 %v432, 16
      %v458 = vpop.permute.xlu0 %457
      %460 = vst.msk [vmem:[%s454] sm:$0xff] %vm403, %v458
      %462 = vrot.lane.b32.xlu0 %v452, 32
      %v463 = vpop.permute.xlu0 %462
      %465 = vst.msk [vmem:[%s454] sm:$0xff] %vm409, %v463
      %466 = vmatpush.msra.mxu0 0.0
      %467 = vmatpush.msra.mxu0 0.0
      %468 = vmatpush.msra.mxu0 0.0
      %469 = vmatpush.msra.mxu0 0.0
      %470 = vmatpush.msra.mxu0 0.0
      %471 = vmatpush.msra.mxu0 0.0
      %472 = vmatpush.msra.mxu0 0.0
      %473 = vmatpush.msra.mxu0 0.0
      %474 = vmatpush.msra.mxu0 0.0
      %475 = vmatpush.msra.mxu0 0.0
      %476 = vmatpush.msra.mxu0 0.0
      %477 = vmatpush.msra.mxu0 0.0
      %478 = vmatpush.msra.mxu0 0.0
      %479 = vmatpush.msra.mxu0 0.0
      %480 = vmatpush.msra.mxu0 %v297
      %481 = vmatpush.msra.mxu0 %v294
      %482 = vmatmul.f32.gmra.mxu0 %v347
      %v483 = vpop.f32.mrf.mxu0
      %v484 = vadd.f32 0.0, %v483
      %485 = vmatmul.f32.gmra.mxu0 %v350
      %v486 = vpop.f32.mrf.mxu0
      %v487 = vadd.f32 0.0, %v486
      %488 = vdwg.mxu0
      %489 = vmatpush.msra.mxu0 0.0
      %490 = vmatpush.msra.mxu0 0.0
      %491 = vmatpush.msra.mxu0 0.0
      %492 = vmatpush.msra.mxu0 0.0
      %493 = vmatpush.msra.mxu0 0.0
      %494 = vmatpush.msra.mxu0 0.0
      %495 = vmatpush.msra.mxu0 0.0
      %496 = vmatpush.msra.mxu0 0.0
      %497 = vmatpush.msra.mxu0 0.0
      %498 = vmatpush.msra.mxu0 0.0
      %499 = vmatpush.msra.mxu0 0.0
      %500 = vmatpush.msra.mxu0 0.0
      %501 = vmatpush.msra.mxu0 0.0
      %502 = vmatpush.msra.mxu0 0.0
      %503 = vmatpush.msra.mxu0 %v340
      %504 = vmatpush.msra.mxu0 %v337
      %505 = vmatmul.f32.gmra.mxu0 %v376
      %v506 = vpop.f32.mrf.mxu0
      %v507 = vadd.f32 0.0, %v506
      %508 = vdwg.mxu0
      %s509 = scalar_lea.vmem %s229, 16
      %510 = vst.msk [vmem:[%s509] sm:$0xff] %vm345, %v484
      %512 = vrot.lane.b32.xlu0 %v487, 16
      %v513 = vpop.permute.xlu0 %512
      %515 = vst.msk [vmem:[%s509] sm:$0xff] %vm403, %v513
      %517 = vrot.lane.b32.xlu0 %v507, 32
      %v518 = vpop.permute.xlu0 %517
      %520 = vst.msk [vmem:[%s509] sm:$0xff] %vm409, %v518
      %s521 = smul.u32 3, %s16
      %p522 = scmp.lt.s32.totalorder %s521, 5
      %s523 = scalar_select %p522, %s521, 5
      %s524 = smul.addr %s523, 8
      %s525 = scalar_lea.vmem %s5, %s524
      // Predicated region
      $region41: #{_resize_fill_batched.1} parent=39 // pred_check
        %p526 = pneg %p144
      $region42: #{_resize_fill_batched.1} parent=39 // pred_check_branch
        %528 = sbr.rel (%p526) target = $region44
      $region43: #{_resize_fill_batched.1} parent=39 // pred_region
        %s529 = smul.u32 3, %s16
      $region44: #{_resize_fill_batched.1} parent=39 // pred_fallthru
        _
    $region40: #{_resize_fill_batched.1} parent=5 // pred_fallthru
      _
    %p530 = scmp.le.s32.totalorder 2, %s11
    // Predicated region
    $region45: #{_resize_fill_batched.1} parent=5 // pred_check
      %p531 = pneg %p530
    $region46: #{_resize_fill_batched.1} parent=5 // pred_check_branch
      %533 = sbr.rel (%p531) target = $region48
    $region47: #{_resize_fill_batched.1} parent=5 // pred_region
      %s534 = ssub.s32 %s11, 2
      // Predicated region
      $region49: #{_resize_fill_batched.1} parent=47 // pred_check
        %p535 = pneg %p150
      $region50: #{_resize_fill_batched.1} parent=47 // pred_check_branch
        %537 = sbr.rel (%p535) target = $region52
      $region51: #{_resize_fill_batched.1} parent=47 // pred_region
        %s538 = smul.u32 3, %s17
        %p539 = scmp.lt.s32.totalorder %s538, 5
        %s540 = scalar_select %p539, %s538, 5
        %s541 = smul.addr %s540, 8
        %s542 = scalar_lea.vmem %s5, %s541
      $region52: #{_resize_fill_batched.1} parent=47 // pred_fallthru
        _
    $region48: #{_resize_fill_batched.1} parent=5 // pred_fallthru
      _
  $region6: #{_resize_fill_batched.1} parent=0 // loop_footer
    %s15 = sadd.s32 1, %s11
  $region7: #{_resize_fill_batched.1} parent=0 // loop_footer_branch
    %10 = sbr.rel target = $region3
  $region8: #{_resize_fill_batched.1} parent=0 // loop_exit
    _

</llo_original>
